<compile_context>
chip_gen: v6e
topology: v6e:2x2x1
jax: 0.10.0
libtpu: 0.0.40
codegen_flags: <defaults>
</compile_context>

<pallas_src>
import functools
import numpy as np

import jax
import jax.numpy as jnp
from jax import lax
from jax.experimental import pallas as pl
from jax.experimental.pallas import tpu as pltpu


# ----------------------------------------------------------------------------
# Kernel 1: softmax over classes, max prob + argmax label + keep mask
#   one launch for the whole batch, one packed (B, Q, 8) output
# ----------------------------------------------------------------------------
def _score_label_kernel(logits_ref, out_ref, *, threshold, no_object):
    x = logits_ref[0].astype(jnp.float32)                     # (Q, C)
    m = jnp.max(x, axis=-1, keepdims=True)
    e = jnp.exp(x - m)
    probs = e / jnp.sum(e, axis=-1, keepdims=True)
    pmax = jnp.max(probs, axis=-1, keepdims=True)             # (Q, 1)
    cidx = lax.broadcasted_iota(jnp.int32, probs.shape, 1)
    # first index attaining the max (softmax is monotone -> same as torch argmax)
    lab = jnp.min(jnp.where(probs == pmax, cidx, probs.shape[1]),
                  axis=-1, keepdims=True)                     # (Q, 1)
    keep = ((lab != no_object) & (pmax > threshold)).astype(jnp.float32)
    pad = jnp.zeros((x.shape[0], 5), jnp.float32)
    # lanes: 0 = score, 1 = label, 2 = keep, 3..7 = padding
    out_ref[0] = jnp.concatenate([pmax, lab.astype(jnp.float32), keep, pad], axis=-1)


def score_label_keep(logits, threshold):
    B, Q, C = logits.shape
    kern = functools.partial(_score_label_kernel,
                             threshold=float(threshold), no_object=C - 1)
    return pl.pallas_call(
        kern,
        grid=(B,),
        in_specs=[pl.BlockSpec((1, Q, C), lambda b: (b, 0, 0))],
        out_specs=pl.BlockSpec((1, Q, 8), lambda b: (b, 0, 0)),
        out_shape=jax.ShapeDtypeStruct((B, Q, 8), jnp.float32),
        compiler_params=pltpu.CompilerParams(dimension_semantics=("parallel",)),
    )(logits)


# ----------------------------------------------------------------------------
# Bilinear interpolation weights (PyTorch align_corners=False semantics)
# ----------------------------------------------------------------------------
@functools.lru_cache(maxsize=None)
def _bilinear_matrix(out_size, in_size):
    """Row weights of F.interpolate(mode='bilinear', align_corners=False)."""
    if in_size == out_size:
        return np.eye(out_size, dtype=np.float32)
    scale = in_size / out_size
    d = np.arange(out_size, dtype=np.float64)
    src = (d + 0.5) * scale - 0.5
    src = np.clip(src, 0.0, None)                 # torch clamps negative src to 0
    x0 = np.clip(np.floor(src).astype(np.int64), 0, in_size - 1)
    x1 = np.minimum(x0 + 1, in_size - 1)
    lam = src - x0
    W = np.zeros((out_size, in_size), dtype=np.float32)
    W[np.arange(out_size), x0] += (1.0 - lam)
    W[np.arange(out_size), x1] += lam
    return W


# ----------------------------------------------------------------------------
# Kernel 2 (fused): bilinear upsample + per-pixel argmax + remap + pixel counts
#   grid tiles the output rows; the full-res masks never touch HBM.
# ----------------------------------------------------------------------------
def _fused_kernel(wh_ref, wwt_ref, m_ref, bias_ref, remap_ref, mid_ref, cnt_ref, *,
                  Hout):
    Q, hin, win_in = m_ref.shape
    TR = wh_ref.shape[0]
    Wout = wwt_ref.shape[1]

    # ---- upsample this row tile for all Q masks: two MXU matmuls, bf16 in / f32 acc
    wh = wh_ref[...]                                               # (TR, hin) bf16
    whb = jnp.broadcast_to(wh[None, :, :], (Q, TR, hin))
    # height expansion first (TR is small) -> fewer FLOPs than width-first per tile
    t1 = jnp.einsum('qri,qij->qrj', whb, m_ref[...],
                    preferred_element_type=jnp.float32)            # (Q, TR, win_in)
    # f32 reshape keeps the (8,128) tiling intact (TR % 8 == 0); cast after.
    t1 = t1.reshape(Q * TR, win_in).astype(jnp.bfloat16)
    up = jnp.dot(t1, wwt_ref[...],
                 preferred_element_type=jnp.float32)               # (Q*TR, Wout)
    up = up.reshape(Q, TR, Wout) + bias_ref[...]                   # validity bias 0/-1e30

    # ---- per-pixel argmax over queries (first max index == torch), compares in f32
    maxv = jnp.max(up, axis=0, keepdims=True)                      # (1, TR, Wout)
    qidx = lax.broadcasted_iota(jnp.int32, (Q, TR, Wout), 0)
    m_id = jnp.min(jnp.where(up == maxv, qidx, Q), axis=0)         # (TR, Wout)
    winner = (qidx == m_id[None, :, :]).astype(jnp.float32)        # exact winner one-hot

    # ---- dedup / compaction: single fused <one-hot, remap> contraction over Q
    #      (replaces the old K-deep unrolled where() chain)
    mid_ref[...] = jnp.sum(winner * remap_ref[...], axis=0).astype(jnp.int32)

    # ---- per raw-query pixel counts for this tile (host aggregates -> areas)
    cnt_src = winner
    if Hout % TR != 0:                       # exclude padded output rows from counts
        row = lax.broadcasted_iota(jnp.int32, (1, TR, 1), 1) + pl.program_id(0) * TR
        cnt_src = winner * (row < Hout).astype(jnp.float32)
    counts = jnp.sum(jnp.sum(cnt_src, axis=2), axis=1, keepdims=True)   # (Q, 1)
    cnt_ref[...] = jnp.broadcast_to(counts.reshape(1, Q, 1), (1, Q, 8))


def fused_upsample_argmax(masks_bf16, Hout, Wout, bias_np, remap_np, *, row_tile=8):
    """Fused bilinear upsample + argmax over queries + remap + per-query counts.

    masks_bf16: (Q, h, w) bf16 low-res mask logits (all queries; invalid rows are
                excluded via `bias_np` = -1e30 so shapes stay fixed -> one compile).
    Returns (id_map (Hout, Wout) int32, counts (T, Q, 8) f32) with counts[:, :, 0]
    holding per-row-tile pixel counts per raw query.
    """
    Q, hin, win_in = masks_bf16.shape
    assert row_tile % 8 == 0
    T = -(-Hout // row_tile)
    Hpad = T * row_tile
    wh = _bilinear_matrix(Hout, hin)
    if Hpad > Hout:
        wh = np.pad(wh, ((0, Hpad - Hout), (0, 0)))
    Wh = jnp.asarray(wh, jnp.bfloat16)                                # (Hpad, hin)
    WwT = jnp.asarray(_bilinear_matrix(Wout, win_in).T, jnp.bfloat16)  # (win_in, Wout)
    bias = jnp.asarray(bias_np.reshape(Q, 1, 1))
    remap = jnp.asarray(remap_np.reshape(Q, 1, 1))
    kern = functools.partial(_fused_kernel, Hout=Hout)
    # NOTE: for production DETR sizes (Q~100, W~1333) keep row_tile=8 so the
    # (Q, TR, Wout) f32 slab + bf16 masks stay inside 64 MiB VMEM on v7x; raise
    # row_tile / vmem_limit_bytes on v5e/v6e (128 MiB) if the DMA is exposed.
    mid, cnt = pl.pallas_call(
        kern,
        grid=(T,),
        in_specs=[pl.BlockSpec((row_tile, hin), lambda r: (r, 0)),
                  pl.BlockSpec((win_in, Wout), lambda r: (0, 0)),
                  pl.BlockSpec((Q, hin, win_in), lambda r: (0, 0, 0)),
                  pl.BlockSpec((Q, 1, 1), lambda r: (0, 0, 0)),
                  pl.BlockSpec((Q, 1, 1), lambda r: (0, 0, 0))],
        out_specs=[pl.BlockSpec((row_tile, Wout), lambda r: (r, 0)),
                   pl.BlockSpec((1, Q, 8), lambda r: (r, 0, 0))],
        out_shape=[jax.ShapeDtypeStruct((Hout, Wout), jnp.int32),
                   jax.ShapeDtypeStruct((T, Q, 8), jnp.float32)],
        compiler_params=pltpu.CompilerParams(
            dimension_semantics=("parallel",),
            vmem_limit_bytes=32 * 1024 * 1024),
    )(Wh, WwT, masks_bf16, bias, remap)
    return mid, cnt


# ----------------------------------------------------------------------------
# Host-side forward (reproduces PostProcessPanoptic.forward control flow)
# ----------------------------------------------------------------------------
def post_process_panoptic(outputs, processed_sizes, is_thing_map,
                          threshold=0.85, target_sizes=None):
    if target_sizes is None:
        target_sizes = processed_sizes
    assert len(processed_sizes) == len(target_sizes)

    out_logits = outputs["pred_logits"]     # (B, Q, C)
    raw_masks = outputs["pred_masks"]       # (B, Q, h, w)
    assert out_logits.shape[0] == raw_masks.shape[0] == len(target_sizes)
    B, Q, C = out_logits.shape

    # one launch + one D2H pull for scores / labels / keep of the whole batch
    packed = np.asarray(score_label_keep(out_logits, threshold))   # (B, Q, 8)
    # cast once: halves the HBM read of the low-res masks in the fused kernel
    masks_bf16 = raw_masks.astype(jnp.bfloat16)

    preds = []
    for b in range(B):
        size = tuple(int(s) for s in processed_sizes[b])
        tgt = tuple(int(s) for s in target_sizes[b])
        # TODO(synk): PIL NEAREST resize of the id map to target_size (plus the
        # id2rgb/rgb2id round trip) has no Pallas equivalent; require
        # target_size == processed_size (the reference default), where it is identity.
        assert tgt == size
        Hs, Ws = size

        scores_all = packed[b, :, 0]
        labels_all = packed[b, :, 1].astype(np.int64)
        keep_np = packed[b, :, 2] > 0.5
        keep_idx = np.nonzero(keep_np)[0]

        if keep_idx.size == 0:
            preds.append({"seg_map": jnp.zeros((Hs, Ws), jnp.int32),
                          "segments_info": []})
            continue

        K = keep_idx.size
        cur_scores = scores_all[keep_idx]
        cur_classes = labels_all[keep_idx]

        # stuff-equivalence dedup table in compact kept-index space
        dedup = np.arange(K, dtype=np.int64)
        first_of_stuff = {}
        for i, lab in enumerate(cur_classes.tolist()):
            lab = int(lab)
            if not is_thing_map[lab]:
                if lab in first_of_stuff:
                    dedup[i] = first_of_stuff[lab]
                else:
                    first_of_stuff[lab] = i

        # full-Q remap / validity-bias -> fixed shapes (single compile for every
        # image and every re-run); non-kept rows can never win the argmax.
        remap = np.zeros((Q,), np.float32)
        remap[keep_idx] = dedup.astype(np.float32)
        bias = np.full((Q,), -1e30, np.float32)
        bias[keep_idx] = 0.0

        seg_map, cnt = fused_upsample_argmax(masks_bf16[b], Hs, Ws, bias, remap)
        counts = np.asarray(cnt)[:, :, 0].sum(axis=0, dtype=np.float64)   # (Q,)
        area = np.zeros((K,), np.float64)
        np.add.at(area, dedup, counts[keep_idx])      # areas of the deduped id map
        area = area.astype(np.int64)

        # NOTE: box_cxcywh_to_xyxy of the kept boxes is computed by the reference
        # but not used in the returned prediction; omitted here.

        # small-area (<=4) filter loop: re-run the same fused kernel with updated
        # validity/remap vectors (no dedup, no row gather, masks reused in place).
        alive = np.arange(K)
        while alive.size > 0:
            small = area <= 4
            if not small.any():
                break
            keep_rows = ~small
            alive = alive[keep_rows]
            cur_scores = cur_scores[keep_rows]
            cur_classes = cur_classes[keep_rows]
            if alive.size == 0:
                seg_map = jnp.zeros((Hs, Ws), jnp.int32)
                area = np.zeros((0,), np.int64)
                break
            raw_alive = keep_idx[alive]
            remap2 = np.zeros((Q,), np.float32)
            remap2[raw_alive] = np.arange(alive.size, dtype=np.float32)
            bias2 = np.full((Q,), -1e30, np.float32)
            bias2[raw_alive] = 0.0
            seg_map, cnt = fused_upsample_argmax(masks_bf16[b], Hs, Ws, bias2, remap2)
            counts = np.asarray(cnt)[:, :, 0].sum(axis=0, dtype=np.float64)
            area = counts[raw_alive].astype(np.int64)

        segments_info = []
        for i, a in enumerate(area.tolist()):
            cat = int(cur_classes[i])
            segments_info.append({"id": i, "isthing": bool(is_thing_map[cat]),
                                  "category_id": cat, "area": int(a)})

        # TODO(synk): PNG encoding ('png_string' via PIL/io.BytesIO) has no Pallas
        # equivalent; the raw panoptic id map is returned instead.
        preds.append({"seg_map": seg_map, "segments_info": segments_info})
    return preds


# ----------------------------------------------------------------------------
if __name__ == "__main__":
    key = jax.random.PRNGKey(0)
    B, Q, C = 2, 8, 16          # C includes the trailing "no object" class
    h, w = 16, 16               # model mask resolution
    H, W = 32, 32               # processed (and target) image size

    k1, k2, k3 = jax.random.split(key, 3)
    pred_logits = 3.0 * jax.random.normal(k1, (B, Q, C), jnp.float32)
    pred_masks = jax.random.normal(k2, (B, Q, h, w), jnp.float32)
    pred_boxes = jax.nn.sigmoid(jax.random.normal(k3, (B, Q, 4), jnp.float32))

    outputs = {"pred_logits": pred_logits,
               "pred_masks": pred_masks,
               "pred_boxes": pred_boxes}

    # deterministic is_thing_map: even class ids are "things", odd are "stuff"
    is_thing_map = {i: (i % 2 == 0) for i in range(C)}

    preds = post_process_panoptic(
        outputs,
        processed_sizes=[(H, W)] * B,
        is_thing_map=is_thing_map,
        threshold=0.10,
    )

    for p in preds:
        jax.block_until_ready(p["seg_map"])
    print("KERNEL_OK")
</pallas_src>

<mosaic_0001>
module attributes {stable_mosaic.version = 11 : i64} {
  func.func @_score_label_kernel(%arg0: i32, %arg1: memref<1x8x16xf32, #tpu.memory_space<vmem>>, %arg2: memref<1x8x8xf32, #tpu.memory_space<vmem>>) attributes {dimension_semantics = [#tpu.dimension_semantics<parallel>], iteration_bounds = array<i64: 2>, scalar_prefetch = 0 : i64, scratch_operands = 0 : i64, tpu.core_type = #tpu.core_type<tc>, window_params = [{transform_indices = @transform_0, window_bounds = array<i64: 1, 8, 16>}, {transform_indices = @transform_1, window_bounds = array<i64: 1, 8, 8>}]} {
    %c0 = arith.constant 0 : index
    %c0_0 = arith.constant 0 : index
    %c0_1 = arith.constant 0 : index
    %0 = vector.load %arg1[%c0, %c0_0, %c0_1] : memref<1x8x16xf32, #tpu.memory_space<vmem>>, vector<1x8x16xf32>
    %1 = vector.shape_cast %0 : vector<1x8x16xf32> to vector<8x16xf32>
    %cst = arith.constant dense<0xFF800000> : vector<8xf32>
    %2 = vector.multi_reduction <maximumf>, %1, %cst [1] : vector<8x16xf32> to vector<8xf32>
    %3 = vector.shape_cast %2 : vector<8xf32> to vector<8x1xf32>
    %4 = vector.broadcast %3 : vector<8x1xf32> to vector<8x16xf32>
    %5 = arith.subf %1, %4 : vector<8x16xf32>
    %6 = math.exp %5 : vector<8x16xf32>
    %cst_2 = arith.constant dense<0.000000e+00> : vector<8xf32>
    %7 = vector.multi_reduction <add>, %6, %cst_2 [1] : vector<8x16xf32> to vector<8xf32>
    %8 = vector.shape_cast %7 : vector<8xf32> to vector<8x1xf32>
    %9 = vector.broadcast %8 : vector<8x1xf32> to vector<8x16xf32>
    %10 = arith.divf %6, %9 : vector<8x16xf32>
    %cst_3 = arith.constant dense<0xFF800000> : vector<8xf32>
    %11 = vector.multi_reduction <maximumf>, %10, %cst_3 [1] : vector<8x16xf32> to vector<8xf32>
    %12 = vector.shape_cast %11 : vector<8xf32> to vector<8x1xf32>
    %13 = tpu.iota {dimensions = array<i32: 1>} : vector<8x16xi32>
    %14 = vector.broadcast %12 : vector<8x1xf32> to vector<8x16xf32>
    %15 = arith.cmpf oeq, %10, %14 : vector<8x16xf32>
    %c16_i32 = arith.constant 16 : i32
    %16 = vector.broadcast %c16_i32 : i32 to vector<8x16xi32>
    %17 = arith.select %15, %13, %16 : vector<8x16xi1>, vector<8x16xi32>
    %cst_4 = arith.constant dense<2147483647> : vector<8xi32>
    %18 = vector.multi_reduction <minsi>, %17, %cst_4 [1] : vector<8x16xi32> to vector<8xi32>
    %19 = vector.shape_cast %18 : vector<8xi32> to vector<8x1xi32>
    %c15_i32 = arith.constant 15 : i32
    %20 = vector.broadcast %c15_i32 : i32 to vector<8x1xi32>
    %21 = arith.cmpi ne, %19, %20 : vector<8x1xi32>
    %cst_5 = arith.constant 1.000000e-01 : f32
    %22 = vector.broadcast %cst_5 : f32 to vector<8x1xf32>
    %23 = arith.cmpf ogt, %12, %22 : vector<8x1xf32>
    %24 = arith.andi %21, %23 : vector<8x1xi1>
    %25 = arith.extui %24 : vector<8x1xi1> to vector<8x1xi32>
    %26 = arith.sitofp %25 : vector<8x1xi32> to vector<8x1xf32>
    %cst_6 = arith.constant 0.000000e+00 : f32
    %27 = vector.broadcast %cst_6 : f32 to vector<8x5xf32>
    %28 = arith.sitofp %19 : vector<8x1xi32> to vector<8x1xf32>
    %29 = tpu.concatenate %12, %28, %26, %27 in 1 : vector<8x1xf32>, vector<8x1xf32>, vector<8x1xf32>, vector<8x5xf32> -> vector<8x8xf32>
    %c0_7 = arith.constant 0 : index
    %c0_8 = arith.constant 0 : index
    %c0_9 = arith.constant 0 : index
    %30 = vector.load %arg2[%c0_7, %c0_8, %c0_9] : memref<1x8x8xf32, #tpu.memory_space<vmem>>, vector<1x8x8xf32>
    %31 = vector.shape_cast %30 : vector<1x8x8xf32> to vector<8x8xf32>
    %32 = vector.shape_cast %29 : vector<8x8xf32> to vector<1x8x8xf32>
    tpu.vector_store %arg2[%c0_7, %c0_8, %c0_9], %32 {strides = array<i32>} : memref<1x8x8xf32, #tpu.memory_space<vmem>>, vector<1x8x8xf32>,
    return
  }
  func.func @transform_0(%arg0: i32) -> (i32, i32, i32) {
    %c0_i32 = arith.constant 0 : i32
    %c0_i32_0 = arith.constant 0 : i32
    %c0_i32_1 = arith.constant 0 : i32
    return %arg0, %c0_i32, %c0_i32_0 : i32, i32, i32
  }
  func.func @transform_1(%arg0: i32) -> (i32, i32, i32) {
    %c0_i32 = arith.constant 0 : i32
    %c0_i32_0 = arith.constant 0 : i32
    %c0_i32_1 = arith.constant 0 : i32
    return %arg0, %c0_i32, %c0_i32_0 : i32, i32, i32
  }
}

</mosaic_0001>

<llo_original>
// kernel: tpu_custom_call.1
$region0: #{tpu_custom_call.1}
  #allocation0 [shape = 'u32[]', space=smem, size = 0x4, offset = 0x4, fixed_abs, tag = 'smem constant byte address 0x4 - core index']
  #allocation1 [shape = 'u32[144,128]{1,0:T(1,128)}', space=vmem, size = 0x12000, scoped, tag = 'internal scratch']
  %s0 = inlined_call_operand.hbm [shape: f32[2,8,16], index: 0, kind: input, shape index: {}]
  %s1 = inlined_call_operand.hbm [shape: f32[2,8,8], index: 1, kind: output, shape index: {}]
  %s2 = sld [smem:[#allocation0]]
  $region41: #{tpu_custom_call.1} parent=0
    _
  %s4 = ssub.s32 1, %s2
  %s5 = scalar_select 0, %s4, %s2
  $region1: #{tpu_custom_call.1} parent=0
    #allocation2 [shape = 'u8[8192]{0}', space=vmem, size = 0x2000, scoped, tag = 'input window, operand 0']
    #allocation3 [shape = 's32[2]{0}', space=sflag, size = 0x8, scoped, tag = 'scoped memory for tpu_custom_call.1']
    #allocation4 [shape = 's32[2]{0}', space=sflag, size = 0x8, scoped, tag = 'scoped memory for tpu_custom_call.1']
    #allocation5 [shape = 'u8[8192]{0}', space=vmem, size = 0x2000, scoped, tag = 'output window, operand 0']
    %6 = vsyncpa [#allocation3], 0
    %s7 = scalar_lea.sflag [#allocation3], 1
    %8 = vsyncpa %s7, 0
    %9 = vsyncpa [#allocation4], 0
    %s10 = scalar_lea.sflag [#allocation4], 1
    %11 = vsyncpa %s10, 0
    loop: start=0, step=1, limit=4
    $region2: #{tpu_custom_call.1} parent=1 // loop_pre_header
      _
    $region3: #{tpu_custom_call.1} parent=1 // loop_header
      %s13 = sphi 0, %s17
      %p14 = scmp.ge.s32.totalorder %s13, 4
      %s23 = sphi 0, %s25
      %s26 = sphi 0, %s23
      %s27 = sphi 0, %s26
      %s43 = sphi 0, %s27
      %s49 = sphi 0, %s51
      %s52 = sphi 0, %s49
      %s53 = sphi 0, %s52
      %s69 = sphi 0, %s53
    $region4: #{tpu_custom_call.1} parent=1 // loop_header_branch
      %16 = sbr.rel (%p14) target = $region8
    $region5: #{tpu_custom_call.1} parent=1 // loop_body
      %s18 = ssub.s32 %s13, 1
      %s19 = ssub.s32 %s13, 2
      %s20 = sadd.s32 %s13, 1
      %s21 = ssub.s32 %s13, %s20
      %p22 = scmp.eq.s32.totalorder %s21, 0
      %s24 = sadd.s32 %s23, 1
      %s25 = scalar_select %p22, %s23, %s24
      %p28 = pneg %p22
      %p29 = scmp.eq.s32.totalorder %s13, 1
      %p30 = por %p28, %p29
      %p31 = scmp.ne.s32.totalorder %s23, %s26
      %p32 = scmp.eq.s32.totalorder %s13, 0
      %p33 = por %p31, %p32
      %p34 = scmp.ne.s32.totalorder %s23, %s26
      %p35 = scmp.eq.s32.totalorder %s18, 1
      %p36 = por %p34, %p35
      %p37 = scmp.ne.s32.totalorder %s26, %s27
      %p38 = scmp.eq.s32.totalorder %s18, 0
      %p39 = por %p37, %p38
      %p40 = scmp.ne.s32.totalorder %s26, %s27
      %p41 = scmp.eq.s32.totalorder %s19, 1
      %p42 = por %p40, %p41
      %p44 = scmp.ne.s32.totalorder %s27, %s43
      %p45 = scmp.eq.s32.totalorder %s19, 0
      %p46 = por %p44, %p45
      %s47 = ssub.s32 %s13, %s20
      %p48 = scmp.eq.s32.totalorder %s47, 0
      %s50 = sadd.s32 %s49, 1
      %s51 = scalar_select %p48, %s49, %s50
      %p54 = pneg %p48
      %p55 = scmp.eq.s32.totalorder %s13, 1
      %p56 = por %p54, %p55
      %p57 = scmp.ne.s32.totalorder %s49, %s52
      %p58 = scmp.eq.s32.totalorder %s13, 0
      %p59 = por %p57, %p58
      %p60 = scmp.ne.s32.totalorder %s49, %s52
      %p61 = scmp.eq.s32.totalorder %s18, 1
      %p62 = por %p60, %p61
      %p63 = scmp.ne.s32.totalorder %s52, %s53
      %p64 = scmp.eq.s32.totalorder %s18, 0
      %p65 = por %p63, %p64
      %p66 = scmp.ne.s32.totalorder %s52, %s53
      %p67 = scmp.eq.s32.totalorder %s19, 1
      %p68 = por %p66, %p67
      %p70 = scmp.ne.s32.totalorder %s53, %s69
      %p71 = scmp.eq.s32.totalorder %s19, 0
      %p72 = por %p70, %p71
      %p73 = scmp.le.s32.totalorder 1, %s13
      %p74 = scmp.lt.s32.totalorder %s13, 3
      %p75 = pnand %p73, %p74
      %p76 = pneg %p75
      // Predicated region
      $region9: #{tpu_custom_call.1} parent=5 // pred_check
        _
      $region10: #{tpu_custom_call.1} parent=5 // pred_check_branch
        %78 = sbr.rel (%p75) target = $region12
      $region11: #{tpu_custom_call.1} parent=5 // pred_region
        %s79 = ssub.s32 %s13, 1
      $region12: #{tpu_custom_call.1} parent=5 // pred_fallthru
        _
      %p80 = scmp.lt.s32.totalorder %s13, 2
      // Predicated region
      $region13: #{tpu_custom_call.1} parent=5 // pred_check
        %p81 = pneg %p80
      $region14: #{tpu_custom_call.1} parent=5 // pred_check_branch
        %83 = sbr.rel (%p81) target = $region16
      $region15: #{tpu_custom_call.1} parent=5 // pred_region
        // Predicated region
        $region17: #{tpu_custom_call.1} parent=15 // pred_check
          %p84 = pneg %p33
        $region18: #{tpu_custom_call.1} parent=15 // pred_check_branch
          %86 = sbr.rel (%p84) target = $region20
        $region19: #{tpu_custom_call.1} parent=15 // pred_region
          %s87 = sand.u32 %s23, 1
          %s88 = scalar_lea.sflag [#allocation3], %s87
          %s89 = sand.u32 %s23, 1
          %s90 = smul.addr %s89, 8
          %s91 = scalar_lea.vmem [#allocation2], %s90
          %s93 = ssub.s32 128, 128
          %94 = vsyncadd %s88, %s93
          %s95 = smul.addr %s13, 128
          %s96 = scalar_lea.hbm %s0, %s95
          %s98 = sshll.u32 %s91, 4
          %s99 = int_to_ptr.vmem [resolvable:$true] %s98
          %101 = dma.hbm_to_vmem [thread:$0]  %s96, 128, %s99, %s88
        $region20: #{tpu_custom_call.1} parent=15 // pred_fallthru
          _
      $region16: #{tpu_custom_call.1} parent=5 // pred_fallthru
        _
      %p102 = scmp.le.s32.totalorder 1, %s13
      %p103 = scmp.lt.s32.totalorder %s13, 3
      %p104 = pnand %p102, %p103
      %p105 = pneg %p104
      // Predicated region
      $region21: #{tpu_custom_call.1} parent=5 // pred_check
        _
      $region22: #{tpu_custom_call.1} parent=5 // pred_check_branch
        %107 = sbr.rel (%p104) target = $region24
      $region23: #{tpu_custom_call.1} parent=5 // pred_region
        %s108 = ssub.s32 %s13, 1
        %s109 = sand.u32 %s26, 1
        %s110 = scalar_lea.sflag [#allocation3], %s109
        %s111 = sand.u32 %s26, 1
        %s112 = smul.addr %s111, 8
        %s113 = scalar_lea.vmem [#allocation2], %s112
        // Predicated region
        $region25: #{tpu_custom_call.1} parent=23 // pred_check
          %p114 = pneg %p39
        $region26: #{tpu_custom_call.1} parent=23 // pred_check_branch
          %116 = sbr.rel (%p114) target = $region28
        $region27: #{tpu_custom_call.1} parent=23 // pred_region
          %117 = dma.done %s110, 128
        $region28: #{tpu_custom_call.1} parent=23 // pred_fallthru
          _
        %s118 = sand.u32 %s26, 1
        %s119 = scalar_lea.sflag [#allocation3], %s118
        %s120 = sand.u32 %s26, 1
        %s121 = smul.addr %s120, 8
        %s122 = scalar_lea.vmem [#allocation2], %s121
        %p123 = pneg %p39
        %p124 = pneg %p36
        %p125 = pneg %p65
        %p126 = pneg %p62
        %s127 = sand.u32 %s52, 1
        %s128 = scalar_lea.sflag [#allocation4], %s127
        %s129 = sand.u32 %s52, 1
        %s130 = smul.addr %s129, 8
        %s131 = scalar_lea.vmem [#allocation5], %s130
        %v132 = vld [vmem:[%s113] sm:$0xff]
        %vm133 = vcmask 130048
        %v134 = vsel %vm133, %v132, -inf
        %135 = vmax.xlane.f32.xlu0 %v134
        %v136 = vpop.xlane.xlu0 %135
        %v137 = vsub.f32 %v132, %v136
        %v138 = vmul.f32 %v137, 1.442695
        %v139 = vpow.pop %v138
        %v140 = vsel %vm133, %v139, 0.0
        %141 = vadd.xlane.f32.xlu0 %v140
        %v142 = vpop.xlane.xlu0 %141
        %v143 = vrcp.pop %v142
        %v144 = vmul.f32 %v139, %v143
        %v145 = vsel %vm133, %v144, -inf
        %146 = vmax.xlane.f32.xlu0 %v145
        %v147 = vpop.xlane.xlu0 %146
        %v148 = vlaneseq
        %v149 = vand.u32 %v148, 127
        %vm150 = vcmp.eq.f32.partialorder %v144, %v147
        %v151 = vsel %vm150, %v149, 16
        %v152 = vsel %vm133, %v151, 2147483647
        %v153 = vand.u32 %v152, 65535
        %v154 = vshra.s32 %v152, 16
        %v155 = vcvt.s32.f32 %v153
        %v156 = vcvt.s32.f32 %v154
        %157 = vmin.xlane.f32.xlu0 %v156
        %v158 = vpop.xlane.xlu0 %157
        %vm159 = vcmp.eq.f32.partialorder %v156, %v158
        %v160 = vsel %vm159, %v155, inf
        %161 = vmin.xlane.f32.xlu0 %v160
        %v162 = vpop.xlane.xlu0 %161
        %v163 = vcvt.f32.s32 %v162
        %v164 = vcvt.f32.s32 %v158
        %v165 = vshll.u32 %v164, 16
        %v166 = vadd.s32 %v165, %v163
        %vm167 = vcmp.ne.s32.totalorder %v166, 15
        %vm168 = vcmp.gt.f32.partialorder %v147, 0.1
        %vm169 = vmand %vm167, %vm168
        %v170 = vsel %vm169, 1, 0
        %v171 = vcvt.s32.f32 %v170
        %v172 = vcvt.s32.f32 %v166
        %vm173 = vcmask 7168
        %v174 = vsel %vm173, %v147, %v172
        %vm175 = vcmask 15360
        %v176 = vsel %vm175, %v174, %v171
        %vm177 = vcmask 23552
        %v178 = vsel %vm177, %v176, 0.0
        %vm179 = vcmask 64512
        %180 = vst.msk [vmem:[%s131] sm:$0xff] %vm179, %v178
        %s181 = sand.u32 %s52, 1
        %s182 = scalar_lea.sflag [#allocation4], %s181
        %s183 = sand.u32 %s52, 1
        %s184 = smul.addr %s183, 8
        %s185 = scalar_lea.vmem [#allocation5], %s184
        // Predicated region
        $region29: #{tpu_custom_call.1} parent=23 // pred_check
          %p186 = pneg %p62
        $region30: #{tpu_custom_call.1} parent=23 // pred_check_branch
          %188 = sbr.rel (%p186) target = $region32
        $region31: #{tpu_custom_call.1} parent=23 // pred_region
          %s190 = ssub.s32 128, 128
          %191 = vsyncadd %s182, %s190
          %s192 = smul.addr %s18, 128
          %s193 = scalar_lea.hbm %s1, %s192
          %s195 = sshll.u32 %s185, 4
          %s196 = int_to_ptr.vmem [resolvable:$true] %s195
          %198 = dma.vmem_to_hbm [thread:$0]  %s196, 128, %s193, %s182
        $region32: #{tpu_custom_call.1} parent=23 // pred_fallthru
          _
      $region24: #{tpu_custom_call.1} parent=5 // pred_fallthru
        _
      %p199 = scmp.le.s32.totalorder 2, %s13
      // Predicated region
      $region33: #{tpu_custom_call.1} parent=5 // pred_check
        %p200 = pneg %p199
      $region34: #{tpu_custom_call.1} parent=5 // pred_check_branch
        %202 = sbr.rel (%p200) target = $region36
      $region35: #{tpu_custom_call.1} parent=5 // pred_region
        %s203 = ssub.s32 %s13, 2
        // Predicated region
        $region37: #{tpu_custom_call.1} parent=35 // pred_check
          %p204 = pneg %p68
        $region38: #{tpu_custom_call.1} parent=35 // pred_check_branch
          %206 = sbr.rel (%p204) target = $region40
        $region39: #{tpu_custom_call.1} parent=35 // pred_region
          %s207 = sand.u32 %s53, 1
          %s208 = scalar_lea.sflag [#allocation4], %s207
          %s209 = sand.u32 %s53, 1
          %s210 = smul.addr %s209, 8
          %s211 = scalar_lea.vmem [#allocation5], %s210
          %212 = dma.done %s208, 128
        $region40: #{tpu_custom_call.1} parent=35 // pred_fallthru
          _
      $region36: #{tpu_custom_call.1} parent=5 // pred_fallthru
        _
    $region6: #{tpu_custom_call.1} parent=1 // loop_footer
      %s17 = sadd.s32 1, %s13
    $region7: #{tpu_custom_call.1} parent=1 // loop_footer_branch
      %12 = sbr.rel target = $region3
    $region8: #{tpu_custom_call.1} parent=1 // loop_exit
      _
    %213 = vsyncpa [#allocation3], 1
    %s214 = scalar_lea.sflag [#allocation3], 1
    %215 = vsyncpa %s214, 1
    %216 = vsyncpa [#allocation4], 1
    %s217 = scalar_lea.sflag [#allocation4], 1
    %218 = vsyncpa %s217, 1

</llo_original>
